<compile_context>
chip_gen: v6e
topology: v6e:2x2x1
jax: 0.10.0
libtpu: 0.0.40
codegen_flags: <defaults>
</compile_context>

<pallas_src>
import functools

import jax
import jax.numpy as jnp
from jax import lax
from jax.experimental import pallas as pl
from jax.experimental.pallas import tpu as pltpu


# ---------------------------------------------------------------------------
# Kernel A: fused MLP + dueling head; emits (value + adv) and per-block adv sums.
# ---------------------------------------------------------------------------
def _dqn_head_kernel(nvalid_ref, x_ref, w1_ref, w2_ref, wh_ref, b12_ref, bh_ref,
                     vpa_ref, psum_ref, *, tm):
    i = pl.program_id(0)                      # batch-block index

    x = x_ref[...]                            # (TM, D)  f32
    w1 = w1_ref[...]                          # (D, H)   f32 or bf16
    w2 = w2_ref[...]                          # (H, H)
    wh = wh_ref[...]                          # (H, 1+A) fused value|advantage head
    b1 = b12_ref[0:1, :]                      # (1, H)   f32
    b2 = b12_ref[1:2, :]                      # (1, H)
    bh = bh_ref[...]                          # (1, 1+A)

    # fc1 + relu, fc2 + relu, fused head.  MXU with f32 accumulation;
    # bias / ReLU / everything elementwise stays f32 (v5e-safe).
    h1 = jnp.maximum(
        jnp.dot(x.astype(w1.dtype), w1, preferred_element_type=jnp.float32) + b1, 0.0)
    h2 = jnp.maximum(
        jnp.dot(h1.astype(w2.dtype), w2, preferred_element_type=jnp.float32) + b2, 0.0)
    head = jnp.dot(h2.astype(wh.dtype), wh, preferred_element_type=jnp.float32) + bh

    value = head[:, 0:1]                      # (TM, 1)
    adv = head[:, 1:]                         # (TM, A)

    # value + (adv - mean) == (value + adv) - mean; write the mean-free part now.
    vpa_ref[...] = value + adv

    # Row-validity mask: edge blocks (B not a multiple of TM) and fixed-size
    # replay buffers (n_valid < B) never pollute the global advantage mean.
    row = i * tm + lax.broadcasted_iota(jnp.int32, adv.shape, 0)
    valid = row < nvalid_ref[0]
    s = jnp.sum(jnp.where(valid, adv, 0.0))
    # Broadcast the per-block partial sum into its own (1, 8, 128) output block
    # (layout-legal, and block-exclusive -> the batch axis stays "parallel").
    psum_ref[...] = jnp.broadcast_to(s, psum_ref.shape)


# ---------------------------------------------------------------------------
# Kernel B: subtract the global advantage mean, in place (aliased output).
# ---------------------------------------------------------------------------
def _mean_sub_kernel(mean_ref, vpa_ref, out_ref):
    out_ref[...] = vpa_ref[...] - mean_ref[0, 0]


# ---------------------------------------------------------------------------
# Parameter packing / init / reference.
# ---------------------------------------------------------------------------
def pack_params(p, *, use_bf16=False):
    """One-time packing: fuse the two heads, stack hidden biases, optionally
    pre-cast the (tiny, ~21 KB) weights to bf16.  x is never cast in the wrapper."""
    wdt = jnp.bfloat16 if use_bf16 else jnp.float32
    return {
        "w1": p["w1"].astype(wdt),                                   # (D, H)
        "w2": p["w2"].astype(wdt),                                   # (H, H)
        "wh": jnp.concatenate([p["wv"], p["wa"]], axis=1).astype(wdt),  # (H, 1+A)
        "b12": jnp.concatenate([p["b1"], p["b2"]], axis=0),          # (2, H) f32
        "bh": jnp.concatenate([p["bv"], p["ba"]], axis=1),           # (1, 1+A) f32
    }


def init_params(key, input_dim, output_dim, hidden=64):
    """PyTorch-Linear-style uniform(-1/sqrt(fan_in), 1/sqrt(fan_in)), (in,out) layout."""
    ks = jax.random.split(key, 8)

    def linear(kw, kb, fan_in, fan_out):
        bound = 1.0 / jnp.sqrt(jnp.float32(fan_in))
        w = jax.random.uniform(kw, (fan_in, fan_out), jnp.float32, -bound, bound)
        b = jax.random.uniform(kb, (1, fan_out), jnp.float32, -bound, bound)
        return w, b

    w1, b1 = linear(ks[0], ks[1], input_dim, hidden)
    w2, b2 = linear(ks[2], ks[3], hidden, hidden)
    wv, bv = linear(ks[4], ks[5], hidden, 1)
    wa, ba = linear(ks[6], ks[7], hidden, output_dim)
    return {"w1": w1, "b1": b1, "w2": w2, "b2": b2,
            "wv": wv, "bv": bv, "wa": wa, "ba": ba}


def reference_forward(x, p):
    """Pure-JAX reference replicating the PyTorch forward (global .mean())."""
    h1 = jnp.maximum(x @ p["w1"] + p["b1"], 0.0)
    h2 = jnp.maximum(h1 @ p["w2"] + p["b2"], 0.0)
    value = h2 @ p["wv"] + p["bv"]
    adv = h2 @ p["wa"] + p["ba"]
    return value + (adv - jnp.mean(adv))


# ---------------------------------------------------------------------------
# Wrapper.
# ---------------------------------------------------------------------------
def _lane_pad(n):
    return pl.cdiv(n, 128) * 128


def _vmem_limit_bytes(tm, d, h, ho, a):
    """Budget against the lane-padded VMEM footprint, not logical bytes:
    x/out double-buffered + h1/h2/head temporaries, all padded to 128 lanes."""
    per_row = 4 * (2 * _lane_pad(d) + 2 * _lane_pad(a) + 2 * _lane_pad(h) + _lane_pad(ho))
    est = tm * per_row + (2 << 20)                       # + weights / psum / slack
    return int(max(32 << 20, min(int(1.25 * est), 100 << 20)))


def dueling_dqn_forward(x, packed, *, n_valid=None, tm=4096):
    """x: (B, D) f32.  packed: output of pack_params.  Returns (B, A) f32.

    tm: batch tile (rows per grid step).  Default 4096 (~14 MiB lane-padded
    working set) is safe on v5e/v6e/v7x; raise to 8192+ on v6e, keep <= 8192 on
    v7x (64 MiB VMEM), <= 4096 on v5e.
    n_valid: number of valid leading rows (defaults to B).  Rows >= n_valid are
    excluded from the global advantage mean (fixed-size replay buffers)."""
    B, D = x.shape
    w1, w2, wh = packed["w1"], packed["w2"], packed["wh"]
    b12, bh = packed["b12"], packed["bh"]
    H = w1.shape[1]
    HO = wh.shape[1]
    A = HO - 1

    if B <= tm:
        TM = B                                    # single block == full array dims
    else:
        assert tm % 8 == 0, "tm must be a multiple of 8 (f32 sublane)"
        TM = tm
    NB = pl.cdiv(B, TM)                           # ragged edge block handled by Pallas

    if n_valid is None:
        n_valid = B
    nvalid_arr = jnp.asarray(n_valid, jnp.int32).reshape(1)

    vlim = _vmem_limit_bytes(TM, D, H, HO, A)

    flops = 2 * B * (D * H + H * H + H * HO)
    bytes_a = 4 * (B * D + B * A + NB * 8 * 128) + 4 * (D * H + H * H + H * HO + 2 * H + HO)

    head_kernel = functools.partial(_dqn_head_kernel, tm=TM)

    vpa, psum = pl.pallas_call(
        head_kernel,
        out_shape=(jax.ShapeDtypeStruct((B, A), jnp.float32),
                   jax.ShapeDtypeStruct((NB, 8, 128), jnp.float32)),
        grid=(NB,),
        in_specs=[
            pl.BlockSpec(memory_space=pltpu.MemorySpace.SMEM),   # n_valid scalar
            pl.BlockSpec((TM, D), lambda i: (i, 0)),             # x: pipelined batch blocks
            pl.BlockSpec((D, H), lambda i: (0, 0)),              # weights stay VMEM-resident
            pl.BlockSpec((H, H), lambda i: (0, 0)),
            pl.BlockSpec((H, HO), lambda i: (0, 0)),
            pl.BlockSpec((2, H), lambda i: (0, 0)),
            pl.BlockSpec((1, HO), lambda i: (0, 0)),
        ],
        out_specs=(
            pl.BlockSpec((TM, A), lambda i: (i, 0)),             # value + adv
            pl.BlockSpec((1, 8, 128), lambda i: (i, 0, 0)),       # per-block adv sums
        ),
        compiler_params=pltpu.CompilerParams(
            dimension_semantics=("parallel",),                    # megacore-shardable (v7x)
            vmem_limit_bytes=vlim),
        cost_estimate=pl.CostEstimate(
            flops=flops, transcendentals=0, bytes_accessed=bytes_a),
    )(nvalid_arr, x, w1, w2, wh, b12, bh)

    # Global mean over ALL (n_valid, A) advantage elements (matches torch .mean()).
    adv_mean = jnp.sum(psum[:, 0, 0]) / (nvalid_arr[0].astype(jnp.float32) * A)

    out = pl.pallas_call(
        _mean_sub_kernel,
        out_shape=jax.ShapeDtypeStruct((B, A), jnp.float32),
        grid=(NB,),
        in_specs=[
            pl.BlockSpec(memory_space=pltpu.MemorySpace.SMEM),   # adv_mean scalar
            pl.BlockSpec((TM, A), lambda i: (i, 0)),
        ],
        out_specs=pl.BlockSpec((TM, A), lambda i: (i, 0)),
        input_output_aliases={1: 0},                             # in-place on vpa
        compiler_params=pltpu.CompilerParams(
            dimension_semantics=("parallel",),
            vmem_limit_bytes=vlim),
        cost_estimate=pl.CostEstimate(
            flops=B * A, transcendentals=0, bytes_accessed=8 * B * A),
    )(adv_mean.reshape(1, 1).astype(jnp.float32), vpa)

    return out


if __name__ == "__main__":
    key = jax.random.PRNGKey(0)
    k_params, k_x, k_x2, k_x3 = jax.random.split(key, 4)

    input_dim, output_dim = 16, 8
    params = init_params(k_params, input_dim, output_dim)
    packed = pack_params(params)
    packed_bf16 = pack_params(params, use_bf16=True)

    # 1) Tiny batch (B=2): single block, f32.
    x = jax.random.normal(k_x, (2, input_dim), jnp.float32)
    out = jax.block_until_ready(dueling_dqn_forward(x, packed))
    ref = reference_forward(x, params)
    assert out.shape == (2, output_dim)
    assert jnp.allclose(out, ref, atol=1e-4, rtol=1e-4), "f32 single-block mismatch"

    # 2) Gridded + ragged edge block: B=40, tm=16 -> 3 blocks, last one partial.
    xb = jax.random.normal(k_x2, (40, input_dim), jnp.float32)
    refb = reference_forward(xb, params)
    outb = jax.block_until_ready(dueling_dqn_forward(xb, packed, tm=16))
    assert outb.shape == (40, output_dim)
    assert jnp.allclose(outb, refb, atol=1e-4, rtol=1e-4), "f32 gridded mismatch"

    # 3) Fixed-size buffer with n_valid < B: rows >= 40 excluded from the mean.
    xpad = jnp.concatenate(
        [xb, jax.random.normal(k_x3, (8, input_dim), jnp.float32)], axis=0)
    outp = jax.block_until_ready(dueling_dqn_forward(xpad, packed, tm=16, n_valid=40))
    assert jnp.allclose(outp[:40], refb, atol=1e-4, rtol=1e-4), "n_valid mask mismatch"

    # 4) bf16-weight path (cast-at-the-dot; activations & elementwise stay f32).
    outh = jax.block_until_ready(dueling_dqn_forward(xb, packed_bf16, tm=16))
    assert jnp.allclose(outh, refb, atol=1e-1, rtol=1e-1), "bf16-weight path mismatch"

    print("KERNEL_OK")
</pallas_src>

<mosaic_0001>
module attributes {stable_mosaic.version = 11 : i64} {
  func.func @_dqn_head_kernel(%arg0: i32, %arg1: memref<1xi32, #tpu.memory_space<smem>>, %arg2: memref<2x16xf32, #tpu.memory_space<vmem>>, %arg3: memref<16x64xf32, #tpu.memory_space<vmem>>, %arg4: memref<64x64xf32, #tpu.memory_space<vmem>>, %arg5: memref<64x9xf32, #tpu.memory_space<vmem>>, %arg6: memref<2x64xf32, #tpu.memory_space<vmem>>, %arg7: memref<1x9xf32, #tpu.memory_space<vmem>>, %arg8: memref<2x8xf32, #tpu.memory_space<vmem>>, %arg9: memref<1x8x128xf32, #tpu.memory_space<vmem>>) attributes {dimension_semantics = [#tpu.dimension_semantics<parallel>], iteration_bounds = array<i64: 1>, scalar_prefetch = 0 : i64, scratch_operands = 0 : i64, tpu.core_type = #tpu.core_type<tc>, window_params = [{transform_indices = @transform_0, window_bounds = array<i64: 1>}, {transform_indices = @transform_1, window_bounds = array<i64: 2, 16>}, {pipeline_mode = #tpu.pipeline_mode<synchronous>, transform_indices = @transform_2, window_bounds = array<i64: 16, 64>}, {pipeline_mode = #tpu.pipeline_mode<synchronous>, transform_indices = @transform_3, window_bounds = array<i64: 64, 64>}, {pipeline_mode = #tpu.pipeline_mode<synchronous>, transform_indices = @transform_4, window_bounds = array<i64: 64, 9>}, {pipeline_mode = #tpu.pipeline_mode<synchronous>, transform_indices = @transform_5, window_bounds = array<i64: 2, 64>}, {pipeline_mode = #tpu.pipeline_mode<synchronous>, transform_indices = @transform_6, window_bounds = array<i64: 1, 9>}, {transform_indices = @transform_7, window_bounds = array<i64: 2, 8>}, {transform_indices = @transform_8, window_bounds = array<i64: 1, 8, 128>}]} {
    %c0 = arith.constant 0 : index
    %c0_0 = arith.constant 0 : index
    %0 = vector.load %arg2[%c0, %c0_0] : memref<2x16xf32, #tpu.memory_space<vmem>>, vector<2x16xf32>
    %c0_1 = arith.constant 0 : index
    %c0_2 = arith.constant 0 : index
    %1 = vector.load %arg3[%c0_1, %c0_2] : memref<16x64xf32, #tpu.memory_space<vmem>>, vector<16x64xf32>
    %c0_3 = arith.constant 0 : index
    %c0_4 = arith.constant 0 : index
    %2 = vector.load %arg4[%c0_3, %c0_4] : memref<64x64xf32, #tpu.memory_space<vmem>>, vector<64x64xf32>
    %c0_5 = arith.constant 0 : index
    %c0_6 = arith.constant 0 : index
    %3 = vector.load %arg5[%c0_5, %c0_6] : memref<64x9xf32, #tpu.memory_space<vmem>>, vector<64x9xf32>
    %c0_7 = arith.constant 0 : index
    %c0_8 = arith.constant 0 : index
    %4 = vector.load %arg6[%c0_7, %c0_8] : memref<2x64xf32, #tpu.memory_space<vmem>>, vector<1x64xf32>
    %c1 = arith.constant 1 : index
    %c0_9 = arith.constant 0 : index
    %5 = vector.load %arg6[%c1, %c0_9] : memref<2x64xf32, #tpu.memory_space<vmem>>, vector<1x64xf32>
    %c0_10 = arith.constant 0 : index
    %c0_11 = arith.constant 0 : index
    %6 = vector.load %arg7[%c0_10, %c0_11] : memref<1x9xf32, #tpu.memory_space<vmem>>, vector<1x9xf32>
    %cst = arith.constant dense<0.000000e+00> : vector<2x64xf32>
    %7 = tpu.matmul %0, %1, %cst {dimension_numbers = #tpu.dot_dimension_numbers<[1], [0], [0], [1], [0, 0, 1, 1], [], []>} : vector<2x16xf32>, vector<16x64xf32>, vector<2x64xf32> -> vector<2x64xf32>
    %8 = vector.broadcast %4 : vector<1x64xf32> to vector<2x64xf32>
    %9 = arith.addf %7, %8 : vector<2x64xf32>
    %cst_12 = arith.constant 0.000000e+00 : f32
    %10 = vector.broadcast %cst_12 : f32 to vector<2x64xf32>
    %11 = arith.maximumf %9, %10 : vector<2x64xf32>
    %cst_13 = arith.constant dense<0.000000e+00> : vector<2x64xf32>
    %12 = tpu.matmul %11, %2, %cst_13 {dimension_numbers = #tpu.dot_dimension_numbers<[1], [0], [0], [1], [0, 0, 1, 1], [], []>} : vector<2x64xf32>, vector<64x64xf32>, vector<2x64xf32> -> vector<2x64xf32>
    %13 = vector.broadcast %5 : vector<1x64xf32> to vector<2x64xf32>
    %14 = arith.addf %12, %13 : vector<2x64xf32>
    %cst_14 = arith.constant 0.000000e+00 : f32
    %15 = vector.broadcast %cst_14 : f32 to vector<2x64xf32>
    %16 = arith.maximumf %14, %15 : vector<2x64xf32>
    %cst_15 = arith.constant dense<0.000000e+00> : vector<2x9xf32>
    %17 = tpu.matmul %16, %3, %cst_15 {dimension_numbers = #tpu.dot_dimension_numbers<[1], [0], [0], [1], [0, 0, 1, 1], [], []>} : vector<2x64xf32>, vector<64x9xf32>, vector<2x9xf32> -> vector<2x9xf32>
    %18 = vector.broadcast %6 : vector<1x9xf32> to vector<2x9xf32>
    %19 = arith.addf %17, %18 : vector<2x9xf32>
    %20 = vector.extract_strided_slice %19 {offsets = [0, 0], sizes = [2, 1], strides = [1, 1]} : vector<2x9xf32> to vector<2x1xf32>
    %21 = vector.extract_strided_slice %19 {offsets = [0, 1], sizes = [2, 8], strides = [1, 1]} : vector<2x9xf32> to vector<2x8xf32>
    %22 = vector.broadcast %20 : vector<2x1xf32> to vector<2x8xf32>
    %23 = arith.addf %22, %21 : vector<2x8xf32>
    %c0_16 = arith.constant 0 : index
    %c0_17 = arith.constant 0 : index
    %24 = vector.load %arg8[%c0_16, %c0_17] : memref<2x8xf32, #tpu.memory_space<vmem>>, vector<2x8xf32>
    tpu.vector_store %arg8[%c0_16, %c0_17], %23 {strides = array<i32>} : memref<2x8xf32, #tpu.memory_space<vmem>>, vector<2x8xf32>,
    %c2_i32 = arith.constant 2 : i32
    %25 = arith.muli %arg0, %c2_i32 : i32
    %26 = tpu.iota {dimensions = array<i32: 0>} : vector<2x8xi32>
    %27 = vector.broadcast %25 : i32 to vector<2x8xi32>
    %28 = arith.addi %27, %26 : vector<2x8xi32>
    %c0_18 = arith.constant 0 : index
    %29 = memref.load %arg1[%c0_18] : memref<1xi32, #tpu.memory_space<smem>>
    %30 = vector.broadcast %29 : i32 to vector<2x8xi32>
    %31 = arith.cmpi slt, %28, %30 : vector<2x8xi32>
    %cst_19 = arith.constant 0.000000e+00 : f32
    %32 = vector.broadcast %cst_19 : f32 to vector<2x8xf32>
    %33 = arith.select %31, %21, %32 : vector<2x8xi1>, vector<2x8xf32>
    %34 = vector.shape_cast %33 : vector<2x8xf32> to vector<1x2x8xf32>
    %cst_20 = arith.constant dense<0.000000e+00> : vector<1xf32>
    %35 = vector.multi_reduction <add>, %34, %cst_20 [1, 2] : vector<1x2x8xf32> to vector<1xf32>
    %36 = vector.shape_cast %35 : vector<1xf32> to vector<1x1x1xf32>
    %37 = vector.extract %36[0, 0, 0] : f32 from vector<1x1x1xf32>
    %38 = vector.broadcast %37 : f32 to vector<1x8x128xf32>
    %c0_21 = arith.constant 0 : index
    %c0_22 = arith.constant 0 : index
    %c0_23 = arith.constant 0 : index
    %39 = vector.load %arg9[%c0_21, %c0_22, %c0_23] : memref<1x8x128xf32, #tpu.memory_space<vmem>>, vector<1x8x128xf32>
    tpu.vector_store %arg9[%c0_21, %c0_22, %c0_23], %38 {strides = array<i32>} : memref<1x8x128xf32, #tpu.memory_space<vmem>>, vector<1x8x128xf32>,
    return
  }
  func.func @transform_0(%arg0: i32) -> i32 {
    %c0_i32 = arith.constant 0 : i32
    %c0_i32_0 = arith.constant 0 : i32
    return %c0_i32 : i32
  }
  func.func @transform_1(%arg0: i32) -> (i32, i32) {
    %c0_i32 = arith.constant 0 : i32
    %c0_i32_0 = arith.constant 0 : i32
    return %arg0, %c0_i32 : i32, i32
  }
  func.func @transform_2(%arg0: i32) -> (i32, i32) {
    %c0_i32 = arith.constant 0 : i32
    %c0_i32_0 = arith.constant 0 : i32
    %c0_i32_1 = arith.constant 0 : i32
    return %c0_i32, %c0_i32_0 : i32, i32
  }
  func.func @transform_3(%arg0: i32) -> (i32, i32) {
    %c0_i32 = arith.constant 0 : i32
    %c0_i32_0 = arith.constant 0 : i32
    %c0_i32_1 = arith.constant 0 : i32
    return %c0_i32, %c0_i32_0 : i32, i32
  }
  func.func @transform_4(%arg0: i32) -> (i32, i32) {
    %c0_i32 = arith.constant 0 : i32
    %c0_i32_0 = arith.constant 0 : i32
    %c0_i32_1 = arith.constant 0 : i32
    return %c0_i32, %c0_i32_0 : i32, i32
  }
  func.func @transform_5(%arg0: i32) -> (i32, i32) {
    %c0_i32 = arith.constant 0 : i32
    %c0_i32_0 = arith.constant 0 : i32
    %c0_i32_1 = arith.constant 0 : i32
    return %c0_i32, %c0_i32_0 : i32, i32
  }
  func.func @transform_6(%arg0: i32) -> (i32, i32) {
    %c0_i32 = arith.constant 0 : i32
    %c0_i32_0 = arith.constant 0 : i32
    %c0_i32_1 = arith.constant 0 : i32
    return %c0_i32, %c0_i32_0 : i32, i32
  }
  func.func @transform_7(%arg0: i32) -> (i32, i32) {
    %c0_i32 = arith.constant 0 : i32
    %c0_i32_0 = arith.constant 0 : i32
    return %arg0, %c0_i32 : i32, i32
  }
  func.func @transform_8(%arg0: i32) -> (i32, i32, i32) {
    %c0_i32 = arith.constant 0 : i32
    %c0_i32_0 = arith.constant 0 : i32
    %c0_i32_1 = arith.constant 0 : i32
    return %arg0, %c0_i32, %c0_i32_0 : i32, i32, i32
  }
}

</mosaic_0001>

<llo_original>
// kernel: tpu_custom_call.1
$region0: #{tpu_custom_call.1}
  #allocation0 [shape = 'u32[]', space=smem, size = 0x4, offset = 0x4, fixed_abs, tag = 'smem constant byte address 0x4 - core index']
  #allocation1 [shape = 'u32[144,128]{1,0:T(1,128)}', space=vmem, size = 0x12000, scoped, tag = 'internal scratch']
  #allocation2 [shape = 's32[1]{0:T(128)S(6)}', space=smem, size = 0x200, scoped, tag = 'scoped memory for tpu_custom_call.1']
  %s0 = inlined_call_operand.<no memory space> [shape: s32[1], index: 0, kind: input, shape index: {}]
  %s1 = inlined_call_operand.vmem [shape: f32[2,16], index: 1, kind: input, shape index: {}]
  %s2 = inlined_call_operand.vmem [shape: f32[16,64], index: 2, kind: input, shape index: {}]
  %s3 = inlined_call_operand.vmem [shape: f32[64,64], index: 3, kind: input, shape index: {}]
  %s4 = inlined_call_operand.vmem [shape: f32[64,9], index: 4, kind: input, shape index: {}]
  %s5 = inlined_call_operand.vmem [shape: f32[2,64], index: 5, kind: input, shape index: {}]
  %s6 = inlined_call_operand.vmem [shape: f32[1,9], index: 6, kind: input, shape index: {}]
  %s7 = inlined_call_operand.hbm [shape: f32[2,8], index: 7, kind: output, shape index: {0}]
  %s8 = inlined_call_operand.hbm [shape: f32[1,8,128], index: 8, kind: output, shape index: {1}]
  %9 = xla_tuple %s7, %s8
  %s10 = sld [smem:[#allocation0]]
  $region46: #{tpu_custom_call.1} parent=0
    _
  %s12 = ssub.s32 1, %s10
  %s13 = scalar_select 0, %s12, %s10
  %14 = sst [smem:[#allocation2]] %s0
  $region1: #{tpu_custom_call.1} parent=0
    #allocation3 [shape = 'u8[1024]{0}', space=vmem, size = 0x400, scoped, tag = 'output window, operand 0, single buffered']
    #allocation4 [shape = 's32[1]{0}', space=sflag, size = 0x4, scoped, tag = 'scoped memory for tpu_custom_call.1']
    #allocation5 [shape = 'u8[4096]{0}', space=vmem, size = 0x1000, scoped, tag = 'output window, operand 1, single buffered']
    #allocation6 [shape = 's32[1]{0}', space=sflag, size = 0x4, scoped, tag = 'scoped memory for tpu_custom_call.1']
    %15 = vsyncpa [#allocation4], 0
    %16 = vsyncpa [#allocation6], 0
    // Predicated region
    $region2: #{tpu_custom_call.1} parent=1 // pred_check
      _
    $region3: #{tpu_custom_call.1} parent=1 // pred_check_branch
      %18 = sbr.rel (0) target = $region5
    $region4: #{tpu_custom_call.1} parent=1 // pred_region
      _
    $region5: #{tpu_custom_call.1} parent=1 // pred_fallthru
      _
    // Predicated region
    $region6: #{tpu_custom_call.1} parent=1 // pred_check
      _
    $region7: #{tpu_custom_call.1} parent=1 // pred_check_branch
      %20 = sbr.rel (0) target = $region9
    $region8: #{tpu_custom_call.1} parent=1 // pred_region
      _
    $region9: #{tpu_custom_call.1} parent=1 // pred_fallthru
      _
    // Predicated region
    $region10: #{tpu_custom_call.1} parent=1 // pred_check
      _
    $region11: #{tpu_custom_call.1} parent=1 // pred_check_branch
      %22 = sbr.rel (0) target = $region13
    $region12: #{tpu_custom_call.1} parent=1 // pred_region
      _
    $region13: #{tpu_custom_call.1} parent=1 // pred_fallthru
      _
    // Predicated region
    $region14: #{tpu_custom_call.1} parent=1 // pred_check
      _
    $region15: #{tpu_custom_call.1} parent=1 // pred_check_branch
      %24 = sbr.rel (0) target = $region17
    $region16: #{tpu_custom_call.1} parent=1 // pred_region
      _
    $region17: #{tpu_custom_call.1} parent=1 // pred_fallthru
      _
    // Predicated region
    $region18: #{tpu_custom_call.1} parent=1 // pred_check
      _
    $region19: #{tpu_custom_call.1} parent=1 // pred_check_branch
      %26 = sbr.rel (0) target = $region21
    $region20: #{tpu_custom_call.1} parent=1 // pred_region
      _
    $region21: #{tpu_custom_call.1} parent=1 // pred_fallthru
      _
    // Predicated region
    $region22: #{tpu_custom_call.1} parent=1 // pred_check
      _
    $region23: #{tpu_custom_call.1} parent=1 // pred_check_branch
      %28 = sbr.rel (0) target = $region25
    $region24: #{tpu_custom_call.1} parent=1 // pred_region
      _
    $region25: #{tpu_custom_call.1} parent=1 // pred_fallthru
      _
    // Predicated region
    $region26: #{tpu_custom_call.1} parent=1 // pred_check
      _
    $region27: #{tpu_custom_call.1} parent=1 // pred_check_branch
      %30 = sbr.rel (0) target = $region29
    $region28: #{tpu_custom_call.1} parent=1 // pred_region
      _
    $region29: #{tpu_custom_call.1} parent=1 // pred_fallthru
      _
    %v31 = vld [vmem:[%s1] sm:$0x3]
    %v32 = vld [vmem:[%s2] sm:$0xff]
    %v33 = vld [vmem:[%s2 + $0x8] sm:$0xff]
    %v34 = vld [vmem:[%s3] sm:$0xff]
    %v35 = vld [vmem:[%s3 + $0x8] sm:$0xff]
    %v36 = vld [vmem:[%s3 + $0x10] sm:$0xff]
    %v37 = vld [vmem:[%s3 + $0x18] sm:$0xff]
    %v38 = vld [vmem:[%s3 + $0x20] sm:$0xff]
    %v39 = vld [vmem:[%s3 + $0x28] sm:$0xff]
    %v40 = vld [vmem:[%s3 + $0x30] sm:$0xff]
    %v41 = vld [vmem:[%s3 + $0x38] sm:$0xff]
    %v42 = vld [vmem:[%s4] sm:$0xff]
    %v43 = vld [vmem:[%s4 + $0x8] sm:$0xff]
    %v44 = vld [vmem:[%s4 + $0x10] sm:$0xff]
    %v45 = vld [vmem:[%s4 + $0x18] sm:$0xff]
    %v46 = vld [vmem:[%s4 + $0x20] sm:$0xff]
    %v47 = vld [vmem:[%s4 + $0x28] sm:$0xff]
    %v48 = vld [vmem:[%s4 + $0x30] sm:$0xff]
    %v49 = vld [vmem:[%s4 + $0x38] sm:$0xff]
    %v50 = vld [vmem:[%s5] sm:$0x1]
    %v51 = vld [vmem:[%s5 + $0x1] sm:$0x1]
    %v52 = vld [vmem:[%s6] sm:$0x1]
    %v53 = vlaneseq
    %v54 = vshrl.u32 %v53, 7
    %v55 = vsub.s32 0, %v54
    %v56 = vrot.slane %v50, %v55
    %vm57 = vcmask 130048
    %v59 = vsel %vm57, %v31, 0
    %61 = vmatprep.subr.mxu0 0.0
    %62 = vmatpush1.msra.mxu0 0.0
    %63 = vmatprep.subr.mxu0 0.0
    %64 = vmatpush1.msra.mxu0 0.0
    %65 = vmatprep.subr.mxu0 0.0
    %66 = vmatpush1.msra.mxu0 0.0
    %67 = vmatprep.subr.mxu0 0.0
    %68 = vmatpush1.msra.mxu0 0.0
    %69 = vmatprep.subr.mxu0 0.0
    %70 = vmatpush1.msra.mxu0 0.0
    %71 = vmatprep.subr.mxu0 0.0
    %72 = vmatpush1.msra.mxu0 0.0
    %73 = vmatprep.subr.mxu0 0.0
    %74 = vmatpush1.msra.mxu0 0.0
    %75 = vmatprep.subr.mxu0 0.0
    %76 = vmatpush1.msra.mxu0 0.0
    %77 = vmatprep.subr.mxu0 0.0
    %78 = vmatpush1.msra.mxu0 0.0
    %79 = vmatprep.subr.mxu0 0.0
    %80 = vmatpush1.msra.mxu0 0.0
    %81 = vmatprep.subr.mxu0 0.0
    %82 = vmatpush1.msra.mxu0 0.0
    %83 = vmatprep.subr.mxu0 0.0
    %84 = vmatpush1.msra.mxu0 0.0
    %85 = vmatprep.subr.mxu0 0.0
    %86 = vmatpush1.msra.mxu0 0.0
    %87 = vmatprep.subr.mxu0 0.0
    %88 = vmatpush1.msra.mxu0 0.0
    %89 = vmatprep.subr.mxu0 0.0
    %90 = vmatpush1.msra.mxu0 %v33
    %91 = vmatprep.subr.mxu0 0.0
    %92 = vmatpush1.msra.mxu0 %v32
    %93 = vmatprep.subr.mxu0 0.0
    %94 = vmatpush2.msra.mxu0 0.0
    %95 = vmatprep.subr.mxu0 0.0
    %96 = vmatpush2.msra.mxu0 0.0
    %97 = vmatprep.subr.mxu0 0.0
    %98 = vmatpush2.msra.mxu0 0.0
    %99 = vmatprep.subr.mxu0 0.0
    %100 = vmatpush2.msra.mxu0 0.0
    %101 = vmatprep.subr.mxu0 0.0
    %102 = vmatpush2.msra.mxu0 0.0
    %103 = vmatprep.subr.mxu0 0.0
    %104 = vmatpush2.msra.mxu0 0.0
    %105 = vmatprep.subr.mxu0 0.0
    %106 = vmatpush2.msra.mxu0 0.0
    %107 = vmatprep.subr.mxu0 0.0
    %108 = vmatpush2.msra.mxu0 0.0
    %109 = vmatprep.subr.mxu0 0.0
    %110 = vmatpush2.msra.mxu0 0.0
    %111 = vmatprep.subr.mxu0 0.0
    %112 = vmatpush2.msra.mxu0 0.0
    %113 = vmatprep.subr.mxu0 0.0
    %114 = vmatpush2.msra.mxu0 0.0
    %115 = vmatprep.subr.mxu0 0.0
    %116 = vmatpush2.msra.mxu0 0.0
    %117 = vmatprep.subr.mxu0 0.0
    %118 = vmatpush2.msra.mxu0 0.0
    %119 = vmatprep.subr.mxu0 0.0
    %120 = vmatpush2.msra.mxu0 0.0
    %121 = vmatprep.subr.mxu0 0.0
    %122 = vmatpush2.msra.mxu0 0.0
    %123 = vmatprep.subr.mxu0 0.0
    %124 = vmatpush2.msra.mxu0 0.0
    %125 = vmatprep.mubr.f32.mxu0 0.0
    %126 = vmatmul.mubr.f32.gmra.mxu0 %v59
    %v127 = vpop.f32.mrf.mxu0
    %v128 = vadd.f32 %v56, %v127
    %v129 = vpop.f32.mrf.mxu0
    %130 = vdwg.mxu0
    %v131 = vmax.f32 %v128, 0.0
    %v132 = vlaneseq
    %v133 = vshrl.u32 %v132, 7
    %v134 = vsub.s32 0, %v133
    %v135 = vrot.slane %v51, %v134
    %vm136 = vcmask 523264
    %v138 = vsel %vm136, %v131, 0
    %140 = vmatprep.subr.mxu0 0.0
    %141 = vmatpush1.msra.mxu0 0.0
    %142 = vmatprep.subr.mxu0 0.0
    %143 = vmatpush1.msra.mxu0 0.0
    %144 = vmatprep.subr.mxu0 0.0
    %145 = vmatpush1.msra.mxu0 0.0
    %146 = vmatprep.subr.mxu0 0.0
    %147 = vmatpush1.msra.mxu0 0.0
    %148 = vmatprep.subr.mxu0 0.0
    %149 = vmatpush1.msra.mxu0 0.0
    %150 = vmatprep.subr.mxu0 0.0
    %151 = vmatpush1.msra.mxu0 0.0
    %152 = vmatprep.subr.mxu0 0.0
    %153 = vmatpush1.msra.mxu0 0.0
    %154 = vmatprep.subr.mxu0 0.0
    %155 = vmatpush1.msra.mxu0 0.0
    %156 = vmatprep.subr.mxu0 0.0
    %157 = vmatpush1.msra.mxu0 %v41
    %158 = vmatprep.subr.mxu0 0.0
    %159 = vmatpush1.msra.mxu0 %v40
    %160 = vmatprep.subr.mxu0 0.0
    %161 = vmatpush1.msra.mxu0 %v39
    %162 = vmatprep.subr.mxu0 0.0
    %163 = vmatpush1.msra.mxu0 %v38
    %164 = vmatprep.subr.mxu0 0.0
    %165 = vmatpush1.msra.mxu0 %v37
    %166 = vmatprep.subr.mxu0 0.0
    %167 = vmatpush1.msra.mxu0 %v36
    %168 = vmatprep.subr.mxu0 0.0
    %169 = vmatpush1.msra.mxu0 %v35
    %170 = vmatprep.subr.mxu0 0.0
    %171 = vmatpush1.msra.mxu0 %v34
    %172 = vmatprep.subr.mxu0 0.0
    %173 = vmatpush2.msra.mxu0 0.0
    %174 = vmatprep.subr.mxu0 0.0
    %175 = vmatpush2.msra.mxu0 0.0
    %176 = vmatprep.subr.mxu0 0.0
    %177 = vmatpush2.msra.mxu0 0.0
    %178 = vmatprep.subr.mxu0 0.0
    %179 = vmatpush2.msra.mxu0 0.0
    %180 = vmatprep.subr.mxu0 0.0
    %181 = vmatpush2.msra.mxu0 0.0
    %182 = vmatprep.subr.mxu0 0.0
    %183 = vmatpush2.msra.mxu0 0.0
    %184 = vmatprep.subr.mxu0 0.0
    %185 = vmatpush2.msra.mxu0 0.0
    %186 = vmatprep.subr.mxu0 0.0
    %187 = vmatpush2.msra.mxu0 0.0
    %188 = vmatprep.subr.mxu0 0.0
    %189 = vmatpush2.msra.mxu0 0.0
    %190 = vmatprep.subr.mxu0 0.0
    %191 = vmatpush2.msra.mxu0 0.0
    %192 = vmatprep.subr.mxu0 0.0
    %193 = vmatpush2.msra.mxu0 0.0
    %194 = vmatprep.subr.mxu0 0.0
    %195 = vmatpush2.msra.mxu0 0.0
    %196 = vmatprep.subr.mxu0 0.0
    %197 = vmatpush2.msra.mxu0 0.0
    %198 = vmatprep.subr.mxu0 0.0
    %199 = vmatpush2.msra.mxu0 0.0
    %200 = vmatprep.subr.mxu0 0.0
    %201 = vmatpush2.msra.mxu0 0.0
    %202 = vmatprep.subr.mxu0 0.0
    %203 = vmatpush2.msra.mxu0 0.0
    %204 = vmatprep.mubr.f32.mxu0 0.0
    %205 = vmatmul.mubr.f32.gmra.mxu0 %v138
    %v206 = vpop.f32.mrf.mxu0
    %v207 = vadd.f32 %v135, %v206
    %v208 = vpop.f32.mrf.mxu0
    %209 = vdwg.mxu0
    %v210 = vmax.f32 %v207, 0.0
    %v212 = vlaneseq
    %v213 = vshrl.u32 %v212, 7
    %v214 = vsub.s32 0, %v213
    %v215 = vrot.slane %v52, %v214
    %v218 = vsel %vm136, %v210, 0
    %220 = vmatprep.subr.mxu0 0.0
    %221 = vmatpush1.msra.mxu0 0.0
    %222 = vmatprep.subr.mxu0 0.0
    %223 = vmatpush1.msra.mxu0 0.0
    %224 = vmatprep.subr.mxu0 0.0
    %225 = vmatpush1.msra.mxu0 0.0
    %226 = vmatprep.subr.mxu0 0.0
    %227 = vmatpush1.msra.mxu0 0.0
    %228 = vmatprep.subr.mxu0 0.0
    %229 = vmatpush1.msra.mxu0 0.0
    %230 = vmatprep.subr.mxu0 0.0
    %231 = vmatpush1.msra.mxu0 0.0
    %232 = vmatprep.subr.mxu0 0.0
    %233 = vmatpush1.msra.mxu0 0.0
    %234 = vmatprep.subr.mxu0 0.0
    %235 = vmatpush1.msra.mxu0 0.0
    %236 = vmatprep.subr.mxu0 0.0
    %237 = vmatpush1.msra.mxu0 %v49
    %238 = vmatprep.subr.mxu0 0.0
    %239 = vmatpush1.msra.mxu0 %v48
    %240 = vmatprep.subr.mxu0 0.0
    %241 = vmatpush1.msra.mxu0 %v47
    %242 = vmatprep.subr.mxu0 0.0
    %243 = vmatpush1.msra.mxu0 %v46
    %244 = vmatprep.subr.mxu0 0.0
    %245 = vmatpush1.msra.mxu0 %v45
    %246 = vmatprep.subr.mxu0 0.0
    %247 = vmatpush1.msra.mxu0 %v44
    %248 = vmatprep.subr.mxu0 0.0
    %249 = vmatpush1.msra.mxu0 %v43
    %250 = vmatprep.subr.mxu0 0.0
    %251 = vmatpush1.msra.mxu0 %v42
    %252 = vmatprep.subr.mxu0 0.0
    %253 = vmatpush2.msra.mxu0 0.0
    %254 = vmatprep.subr.mxu0 0.0
    %255 = vmatpush2.msra.mxu0 0.0
    %256 = vmatprep.subr.mxu0 0.0
    %257 = vmatpush2.msra.mxu0 0.0
    %258 = vmatprep.subr.mxu0 0.0
    %259 = vmatpush2.msra.mxu0 0.0
    %260 = vmatprep.subr.mxu0 0.0
    %261 = vmatpush2.msra.mxu0 0.0
    %262 = vmatprep.subr.mxu0 0.0
    %263 = vmatpush2.msra.mxu0 0.0
    %264 = vmatprep.subr.mxu0 0.0
    %265 = vmatpush2.msra.mxu0 0.0
    %266 = vmatprep.subr.mxu0 0.0
    %267 = vmatpush2.msra.mxu0 0.0
    %268 = vmatprep.subr.mxu0 0.0
    %269 = vmatpush2.msra.mxu0 0.0
    %270 = vmatprep.subr.mxu0 0.0
    %271 = vmatpush2.msra.mxu0 0.0
    %272 = vmatprep.subr.mxu0 0.0
    %273 = vmatpush2.msra.mxu0 0.0
    %274 = vmatprep.subr.mxu0 0.0
    %275 = vmatpush2.msra.mxu0 0.0
    %276 = vmatprep.subr.mxu0 0.0
    %277 = vmatpush2.msra.mxu0 0.0
    %278 = vmatprep.subr.mxu0 0.0
    %279 = vmatpush2.msra.mxu0 0.0
    %280 = vmatprep.subr.mxu0 0.0
    %281 = vmatpush2.msra.mxu0 0.0
    %282 = vmatprep.subr.mxu0 0.0
    %283 = vmatpush2.msra.mxu0 0.0
    %284 = vmatprep.mubr.f32.mxu0 0.0
    %285 = vmatmul.mubr.f32.gmra.mxu0 %v218
    %v286 = vpop.f32.mrf.mxu0
    %v287 = vadd.f32 %v215, %v286
    %v288 = vpop.f32.mrf.mxu0
    %289 = vdwg.mxu0
    %291 = vset.pattern.permute.xlu0 0
    %292 = vperm.xlu0 %291, %v287
    %v293 = vpop.permute.xlu0 %292
    %v295 = vadd.f32 %v293, %v287
    %297 = vrot.lane.b32.xlu0 %v295, 127
    %v298 = vpop.permute.xlu0 %297
    %vm300 = vcmask 58368
    %301 = vst.msk [vmem:[#allocation3] sm:$0x3] %vm300, %v298
    %s302 = smul.u32 0, 2
    %v303 = vlaneseq
    %v304 = vshrl.u32 %v303, 7
    %v305 = vstv %s302
    %v306 = vadd.s32 %v305, %v304
    %s307 = sld [smem:[#allocation2]]
    %v308 = vstv %s307
    %vm309 = vcmp.lt.s32.totalorder %v306, %v308
    %v310 = vsel %vm309, %v287, 0.0
    %312 = vrot.lane.b32.xlu0 %v310, 127
    %v313 = vpop.permute.xlu0 %312
    %v315 = vsel %vm300, %v313, 0.0
    %316 = vadd.xlane.f32.xlu0 %v315
    %v317 = vpop.xlane.xlu0 %316
    %v318 = vrot.slane %v317, 4
    %v319 = vadd.f32 %v317, %v318
    %v320 = vrot.slane %v319, 2
    %v321 = vadd.f32 %v319, %v320
    %v322 = vrot.slane %v321, 1
    %v323 = vadd.f32 %v321, %v322
    %s324 = vtos %v323
    %v325 = vstv %s324
    %326 = vst [vmem:[#allocation5] sm:$0xff] %v325
    // Predicated region
    $region30: #{tpu_custom_call.1} parent=1 // pred_check
      _
    $region31: #{tpu_custom_call.1} parent=1 // pred_check_branch
      %328 = sbr.rel (0) target = $region33
    $region32: #{tpu_custom_call.1} parent=1 // pred_region
      %s330 = ssub.s32 32, 32
      %331 = vsyncadd [#allocation4], %s330
      %s333 = sshll.u32 [#allocation3], 4
      %s334 = int_to_ptr.vmem [resolvable:$true] %s333
      %336 = dma.vmem_to_hbm [thread:$0]  %s334, 32, %s7, [#allocation4]
    $region33: #{tpu_custom_call.1} parent=1 // pred_fallthru
      _
    // Predicated region
    $region34: #{tpu_custom_call.1} parent=1 // pred_check
      _
    $region35: #{tpu_custom_call.1} parent=1 // pred_check_branch
      %338 = sbr.rel (0) target = $region37
    $region36: #{tpu_custom_call.1} parent=1 // pred_region
      %s340 = ssub.s32 128, 128
      %341 = vsyncadd [#allocation6], %s340
      %s343 = sshll.u32 [#allocation5], 4
      %s344 = int_to_ptr.vmem [resolvable:$true] %s343
      %346 = dma.vmem_to_hbm [thread:$0]  %s344, 128, %s8, [#allocation6]
    $region37: #{tpu_custom_call.1} parent=1 // pred_fallthru
      _
    // Predicated region
    $region38: #{tpu_custom_call.1} parent=1 // pred_check
      _
    $region39: #{tpu_custom_call.1} parent=1 // pred_check_branch
      %348 = sbr.rel (0) target = $region41
    $region40: #{tpu_custom_call.1} parent=1 // pred_region
      %349 = dma.done [#allocation4], 32
    $region41: #{tpu_custom_call.1} parent=1 // pred_fallthru
      _
    // Predicated region
    $region42: #{tpu_custom_call.1} parent=1 // pred_check
      _
    $region43: #{tpu_custom_call.1} parent=1 // pred_check_branch
      %351 = sbr.rel (0) target = $region45
    $region44: #{tpu_custom_call.1} parent=1 // pred_region
      %352 = dma.done [#allocation6], 128
    $region45: #{tpu_custom_call.1} parent=1 // pred_fallthru
      _
    %353 = vsyncpa [#allocation4], 1
    %354 = vsyncpa [#allocation6], 1

</llo_original>
